<compile_context>
chip_gen: v5e
topology: v5e:2x2
jax: 0.10.0
libtpu: 0.0.40
codegen_flags: <defaults>
</compile_context>

<pallas_src>
import functools

import jax
import jax.numpy as jnp
from jax.experimental import pallas as pl
from jax.experimental.pallas import tpu as pltpu

# Large negative (dtype-aware) fill for masked attention logits.
_MASK_VALUE = float(jnp.finfo(jnp.float32).min) / 2


def _gatv2_kernel(data_ref, p_ref, out_ref, *, f_in, hidden):
    n = data_ref.shape[0]
    r0 = p_ref.shape[0] - 8          # vector rows start here (multiple of 8)

    # --- packed data slab: [x | adj] along lanes (one DMA) ---
    x = data_ref[:, 0:f_in]                        # (N, F_in)
    adj = data_ref[:, f_in:f_in + n]               # (N, N), >0 => edge j->i

    # --- packed parameter slab (one DMA) ---
    w_fused = p_ref[0:f_in, :]                     # (F_in, 3H)
    bias_row = p_ref[r0:r0 + 1, :]                 # (1, 3H): [b_proj|b_src|b_dst]
    vec_row = p_ref[r0 + 1:r0 + 2, :]              # (1, 3H): [att_a|w_pred^T|const]

    att_a = vec_row[:, 0:hidden]                   # (1, H)
    w_pred_row = vec_row[:, hidden:2 * hidden]     # (1, H) == w_pred^T
    y_const = vec_row[0:1, 2 * hidden:2 * hidden + 1]   # (1, 1) = b_gat@w_pred+b_pred

    # --- fused proj + attention projections: ONE MXU matmul (16x8x96) ---
    hgg = jnp.dot(x, w_fused, preferred_element_type=jnp.float32) + bias_row  # (N, 3H)
    h = hgg[:, 0:hidden]                           # proj_layer output
    g_src = hgg[:, hidden:2 * hidden]              # == h @ w_att_src
    g_dst = hgg[:, 2 * hidden:3 * hidden]          # == h @ w_att_dst

    # per-node pred-head projections — independent of the softmax, so they sit
    # off the serial critical path; z_src folds the post-softmax matmul away.
    z_src = jnp.sum(g_src * w_pred_row, axis=-1)               # (N,)
    h_pred = jnp.sum(h * w_pred_row, axis=-1, keepdims=True)   # (N, 1)

    # --- GATv2 attention logits (heads=1) ---
    s = g_dst[:, None, :] + g_src[None, :, :]                  # (N, N, H), 32 KiB
    s = jnp.maximum(s, 0.2 * s)                                # LeakyReLU(0.2)
    e = jnp.sum(s * att_a[None, :, :], axis=-1)                # (N, N)

    # masked softmax over source nodes j (axis=1); mask computed once, reused.
    mask = adj > 0.0
    masked = jnp.where(mask, e, _MASK_VALUE)
    e_max = jnp.max(masked, axis=1, keepdims=True)
    p_un = jnp.where(mask, jnp.exp(masked - e_max), 0.0)
    denom = jnp.sum(p_un, axis=1, keepdims=True)
    denom = jnp.maximum(denom, jnp.float32(1e-30))             # guard edge-less rows
    alpha = p_un / denom                                       # exact divide

    # --- folded aggregation + skip + pred head ---
    # y = alpha @ (g_src @ w_pred) + h @ w_pred + (b_gat @ w_pred + b_pred)
    y_att = jnp.sum(alpha * z_src[None, :], axis=1, keepdims=True)   # (N, 1)
    y = y_att + h_pred + y_const

    # lane-dense store (unmasked vst across the 128-lane slab); wrapper slices.
    out_ref[...] = jnp.broadcast_to(y, out_ref.shape)


def pack_params(params):
    """Fold proj/pred Linears into the GAT weights and pack one param slab."""
    w_proj = params["w_proj"]                       # (F_in, H)
    f_in, hidden = w_proj.shape

    # fused projection weights: h | h@w_att_src | h@w_att_dst from one matmul
    w_fused = jnp.concatenate(
        [w_proj,
         w_proj @ params["w_att_src"],
         w_proj @ params["w_att_dst"]], axis=1)     # (F_in, 3H)

    b_proj = params["b_proj"]                       # (1, H)
    bias_row = jnp.concatenate(
        [b_proj,
         b_proj @ params["w_att_src"],
         b_proj @ params["w_att_dst"]], axis=1)     # (1, 3H)

    w_pred_row = params["w_pred"].T                 # (1, H)
    y_const = params["b_gat"] @ params["w_pred"] + params["b_pred"]   # (1, 1)
    vec_row = jnp.concatenate(
        [params["att_a"], w_pred_row,
         jnp.broadcast_to(y_const, (1, hidden))], axis=1)             # (1, 3H)

    r0 = ((f_in + 7) // 8) * 8                      # vector rows tile-aligned
    slab = jnp.zeros((r0 + 8, 3 * hidden), jnp.float32)
    slab = slab.at[:f_in, :].set(w_fused)
    slab = slab.at[r0, :].set(bias_row[0])
    slab = slab.at[r0 + 1, :].set(vec_row[0])
    return slab                                     # (r0 + 8, 3H)


def gat_v2_forward(x, adj, param_slab, *, f_in, hidden):
    n = x.shape[0]
    # lane-concat x | adj -> one input DMA (tiny; fused under the same jit)
    data = jnp.concatenate([x, adj], axis=1)        # (N, F_in + N)
    kernel = functools.partial(_gatv2_kernel, f_in=f_in, hidden=hidden)
    out_slab = pl.pallas_call(
        kernel,
        out_shape=jax.ShapeDtypeStruct((n, 128), jnp.float32),
        # single grid point; the whole working set lives comfortably in VMEM
        in_specs=[pl.BlockSpec(memory_space=pltpu.MemorySpace.VMEM)] * 2,
        out_specs=pl.BlockSpec(memory_space=pltpu.MemorySpace.VMEM),
    )(data, param_slab)
    return out_slab[:, :1]                          # (N, 1)


def _reference(x, adj, p):
    h = x @ p["w_proj"] + p["b_proj"]
    g_src = h @ p["w_att_src"]
    g_dst = h @ p["w_att_dst"]
    s = g_dst[:, None, :] + g_src[None, :, :]
    s = jnp.where(s >= 0, s, 0.2 * s)
    e = jnp.sum(s * p["att_a"][None, :, :], axis=-1)
    masked = jnp.where(adj > 0, e, -1e9)
    alpha = jax.nn.softmax(masked, axis=1)
    alpha = jnp.where(adj > 0, alpha, 0.0)
    alpha = alpha / jnp.sum(alpha, axis=1, keepdims=True)
    out = alpha @ g_src + h + p["b_gat"]
    return out @ p["w_pred"] + p["b_pred"]


def make_params(key, input_size, hidden_size):
    ks = jax.random.split(key, 6)
    scale_p = 1.0 / jnp.sqrt(input_size)
    scale_h = 1.0 / jnp.sqrt(hidden_size)
    return {
        "w_proj": jax.random.uniform(ks[0], (input_size, hidden_size),
                                     jnp.float32, -scale_p, scale_p),
        "b_proj": jax.random.uniform(ks[1], (1, hidden_size),
                                     jnp.float32, -scale_p, scale_p),
        "w_att_src": jax.random.uniform(ks[2], (hidden_size, hidden_size),
                                        jnp.float32, -scale_h, scale_h),
        "w_att_dst": jax.random.uniform(ks[3], (hidden_size, hidden_size),
                                        jnp.float32, -scale_h, scale_h),
        "att_a": jax.random.uniform(ks[4], (1, hidden_size),
                                    jnp.float32, -scale_h, scale_h),
        "b_gat": jnp.zeros((1, hidden_size), jnp.float32),
        "w_pred": jax.random.uniform(ks[5], (hidden_size, 1),
                                     jnp.float32, -scale_h, scale_h),
        "b_pred": jnp.zeros((1, 1), jnp.float32),
    }


if __name__ == "__main__":
    N, F_IN, HIDDEN = 16, 8, 32

    key = jax.random.PRNGKey(0)
    kx, kadj, kp = jax.random.split(key, 3)

    x = jax.random.normal(kx, (N, F_IN), jnp.float32)
    # random sparse-ish adjacency with guaranteed self loops
    adj = (jax.random.uniform(kadj, (N, N)) > 0.6).astype(jnp.float32)
    adj = jnp.maximum(adj, jnp.eye(N, dtype=jnp.float32))

    params = make_params(kp, F_IN, HIDDEN)
    param_slab = pack_params(params)     # fold + pack once, outside the kernel

    fwd = jax.jit(functools.partial(gat_v2_forward, f_in=F_IN, hidden=HIDDEN))
    out = jax.block_until_ready(fwd(x, adj, param_slab))

    ref = _reference(x, adj, params)
    assert out.shape == (N, 1)
    # Exact softmax divide now; the only remaining numeric difference is f32
    # re-association from the weight folding (w_proj@w_att_* precomputed and
    # the pred head applied before the aggregation), which is ~1e-6 relative.
    assert jnp.allclose(out, ref, atol=5e-4, rtol=5e-4)

    print("KERNEL_OK")
</pallas_src>

<mosaic_0001>
module attributes {stable_mosaic.version = 11 : i64} {
  func.func @_gatv2_kernel(%arg0: memref<16x24xf32, #tpu.memory_space<vmem>>, %arg1: memref<16x96xf32, #tpu.memory_space<vmem>>, %arg2: memref<16x128xf32, #tpu.memory_space<vmem>>) attributes {dimension_semantics = [], scalar_prefetch = 0 : i64, scratch_operands = 0 : i64, tpu.core_type = #tpu.core_type<tc>} {
    %c0 = arith.constant 0 : index
    %c0_0 = arith.constant 0 : index
    %0 = vector.load %arg0[%c0, %c0_0] : memref<16x24xf32, #tpu.memory_space<vmem>>, vector<16x8xf32>
    %c0_1 = arith.constant 0 : index
    %c8 = arith.constant 8 : index
    %1 = vector.load %arg0[%c0_1, %c8] : memref<16x24xf32, #tpu.memory_space<vmem>>, vector<16x16xf32>
    %c0_2 = arith.constant 0 : index
    %c0_3 = arith.constant 0 : index
    %2 = vector.load %arg1[%c0_2, %c0_3] : memref<16x96xf32, #tpu.memory_space<vmem>>, vector<8x96xf32>
    %c8_4 = arith.constant 8 : index
    %c0_5 = arith.constant 0 : index
    %3 = vector.load %arg1[%c8_4, %c0_5] : memref<16x96xf32, #tpu.memory_space<vmem>>, vector<1x96xf32>
    %c9 = arith.constant 9 : index
    %c0_6 = arith.constant 0 : index
    %4 = vector.load %arg1[%c9, %c0_6] : memref<16x96xf32, #tpu.memory_space<vmem>>, vector<1x96xf32>
    %5 = vector.extract_strided_slice %4 {offsets = [0, 0], sizes = [1, 32], strides = [1, 1]} : vector<1x96xf32> to vector<1x32xf32>
    %6 = vector.extract_strided_slice %4 {offsets = [0, 32], sizes = [1, 32], strides = [1, 1]} : vector<1x96xf32> to vector<1x32xf32>
    %7 = vector.extract_strided_slice %4 {offsets = [0, 64], sizes = [1, 1], strides = [1, 1]} : vector<1x96xf32> to vector<1x1xf32>
    %cst = arith.constant dense<0.000000e+00> : vector<16x96xf32>
    %8 = tpu.matmul %0, %2, %cst {dimension_numbers = #tpu.dot_dimension_numbers<[1], [0], [0], [1], [0, 0, 1, 1], [], []>} : vector<16x8xf32>, vector<8x96xf32>, vector<16x96xf32> -> vector<16x96xf32>
    %9 = vector.broadcast %3 : vector<1x96xf32> to vector<16x96xf32>
    %10 = arith.addf %8, %9 : vector<16x96xf32>
    %11 = vector.extract_strided_slice %10 {offsets = [0, 0], sizes = [16, 32], strides = [1, 1]} : vector<16x96xf32> to vector<16x32xf32>
    %12 = vector.extract_strided_slice %10 {offsets = [0, 32], sizes = [16, 32], strides = [1, 1]} : vector<16x96xf32> to vector<16x32xf32>
    %13 = vector.extract_strided_slice %10 {offsets = [0, 64], sizes = [16, 32], strides = [1, 1]} : vector<16x96xf32> to vector<16x32xf32>
    %14 = vector.broadcast %6 : vector<1x32xf32> to vector<16x32xf32>
    %15 = arith.mulf %12, %14 : vector<16x32xf32>
    %cst_7 = arith.constant dense<0.000000e+00> : vector<16xf32>
    %16 = vector.multi_reduction <add>, %15, %cst_7 [1] : vector<16x32xf32> to vector<16xf32>
    %17 = vector.broadcast %6 : vector<1x32xf32> to vector<16x32xf32>
    %18 = arith.mulf %11, %17 : vector<16x32xf32>
    %cst_8 = arith.constant dense<0.000000e+00> : vector<16xf32>
    %19 = vector.multi_reduction <add>, %18, %cst_8 [1] : vector<16x32xf32> to vector<16xf32>
    %20 = vector.shape_cast %19 : vector<16xf32> to vector<16x1xf32>
    %21 = vector.shape_cast %13 : vector<16x32xf32> to vector<16x1x32xf32>
    %22 = vector.shape_cast %12 : vector<16x32xf32> to vector<1x16x32xf32>
    %23 = vector.broadcast %21 : vector<16x1x32xf32> to vector<16x16x32xf32>
    %24 = vector.broadcast %22 : vector<1x16x32xf32> to vector<16x16x32xf32>
    %25 = arith.addf %23, %24 : vector<16x16x32xf32>
    %cst_9 = arith.constant 2.000000e-01 : f32
    %26 = vector.broadcast %cst_9 : f32 to vector<16x16x32xf32>
    %27 = arith.mulf %26, %25 : vector<16x16x32xf32>
    %28 = arith.maximumf %25, %27 : vector<16x16x32xf32>
    %29 = vector.shape_cast %5 : vector<1x32xf32> to vector<1x1x32xf32>
    %30 = vector.broadcast %29 : vector<1x1x32xf32> to vector<16x16x32xf32>
    %31 = arith.mulf %28, %30 : vector<16x16x32xf32>
    %cst_10 = arith.constant dense<0.000000e+00> : vector<16x16xf32>
    %32 = vector.multi_reduction <add>, %31, %cst_10 [2] : vector<16x16x32xf32> to vector<16x16xf32>
    %cst_11 = arith.constant 0.000000e+00 : f32
    %33 = vector.broadcast %cst_11 : f32 to vector<16x16xf32>
    %34 = arith.cmpf ogt, %1, %33 : vector<16x16xf32>
    %cst_12 = arith.constant -1.70141173E+38 : f32
    %35 = vector.broadcast %cst_12 : f32 to vector<16x16xf32>
    %36 = arith.select %34, %32, %35 : vector<16x16xi1>, vector<16x16xf32>
    %cst_13 = arith.constant dense<0xFF800000> : vector<16xf32>
    %37 = vector.multi_reduction <maximumf>, %36, %cst_13 [1] : vector<16x16xf32> to vector<16xf32>
    %38 = vector.shape_cast %37 : vector<16xf32> to vector<16x1xf32>
    %39 = vector.broadcast %38 : vector<16x1xf32> to vector<16x16xf32>
    %40 = arith.subf %36, %39 : vector<16x16xf32>
    %41 = math.exp %40 : vector<16x16xf32>
    %cst_14 = arith.constant 0.000000e+00 : f32
    %42 = vector.broadcast %cst_14 : f32 to vector<16x16xf32>
    %43 = arith.select %34, %41, %42 : vector<16x16xi1>, vector<16x16xf32>
    %cst_15 = arith.constant dense<0.000000e+00> : vector<16xf32>
    %44 = vector.multi_reduction <add>, %43, %cst_15 [1] : vector<16x16xf32> to vector<16xf32>
    %45 = vector.shape_cast %44 : vector<16xf32> to vector<16x1xf32>
    %cst_16 = arith.constant 1.000000e-30 : f32
    %46 = vector.broadcast %cst_16 : f32 to vector<16x1xf32>
    %47 = arith.maximumf %45, %46 : vector<16x1xf32>
    %48 = vector.broadcast %47 : vector<16x1xf32> to vector<16x16xf32>
    %49 = arith.divf %43, %48 : vector<16x16xf32>
    %50 = vector.shape_cast %16 : vector<16xf32> to vector<1x16xf32>
    %51 = vector.broadcast %50 : vector<1x16xf32> to vector<16x16xf32>
    %52 = arith.mulf %49, %51 : vector<16x16xf32>
    %cst_17 = arith.constant dense<0.000000e+00> : vector<16xf32>
    %53 = vector.multi_reduction <add>, %52, %cst_17 [1] : vector<16x16xf32> to vector<16xf32>
    %54 = vector.shape_cast %53 : vector<16xf32> to vector<16x1xf32>
    %55 = arith.addf %54, %20 : vector<16x1xf32>
    %56 = vector.broadcast %7 : vector<1x1xf32> to vector<16x1xf32>
    %57 = arith.addf %55, %56 : vector<16x1xf32>
    %58 = vector.shape_cast %57 : vector<16x1xf32> to vector<16x1xf32>
    %59 = vector.broadcast %58 : vector<16x1xf32> to vector<16x128xf32>
    %c0_18 = arith.constant 0 : index
    %c0_19 = arith.constant 0 : index
    %60 = vector.load %arg2[%c0_18, %c0_19] : memref<16x128xf32, #tpu.memory_space<vmem>>, vector<16x128xf32>
    tpu.vector_store %arg2[%c0_18, %c0_19], %59 {strides = array<i32>} : memref<16x128xf32, #tpu.memory_space<vmem>>, vector<16x128xf32>,
    return
  }
}

</mosaic_0001>

<llo_original>
// kernel: gat_v2_forward.1
$region0: #{gat_v2_forward.1}
  #allocation0 [shape = 'u32[]', space=smem, size = 0x4, offset = 0x4, fixed_abs, tag = 'smem constant byte address 0x4 - core index']
  #allocation1 [shape = 'u32[72,128]{1,0:T(1,128)}', space=vmem, size = 0x9000, scoped, tag = 'internal scratch']
  %s0 = inlined_call_operand.vmem [shape: f32[16,24], index: 0, kind: input, shape index: {}]
  %s1 = inlined_call_operand.vmem [shape: f32[16,96], index: 1, kind: input, shape index: {}]
  %s2 = inlined_call_operand.vmem [shape: f32[16,128], index: 2, kind: output, shape index: {}]
  %s3 = sld [smem:[#allocation0]]
  $region18: #{gat_v2_forward.1} parent=0
    _
  %s5 = ssub.s32 1, %s3
  %s6 = scalar_select 0, %s5, %s3
  // Predicated region
  $region2: #{gat_v2_forward.1} parent=0 // pred_check
    _
  $region3: #{gat_v2_forward.1} parent=0 // pred_check_branch
    %8 = sbr.rel (0) target = $region5
  $region4: #{gat_v2_forward.1} parent=0 // pred_region
    _
  $region5: #{gat_v2_forward.1} parent=0 // pred_fallthru
    _
  // Predicated region
  $region6: #{gat_v2_forward.1} parent=0 // pred_check
    _
  $region7: #{gat_v2_forward.1} parent=0 // pred_check_branch
    %10 = sbr.rel (0) target = $region9
  $region8: #{gat_v2_forward.1} parent=0 // pred_region
    _
  $region9: #{gat_v2_forward.1} parent=0 // pred_fallthru
    _
  %v11 = vld [vmem:[%s0] sm:$0xff]
  %v12 = vld [vmem:[%s0 + $0x8] sm:$0xff]
  %v13 = vld [vmem:[%s1] sm:$0xff]
  %v14 = vld [vmem:[%s1 + $0x8] sm:$0x1]
  %v15 = vld [vmem:[%s1 + $0x9] sm:$0x1]
  %v16 = vperm.slane %v14, 0
  %vm17 = vcmask 64512
  %v19 = vsel %vm17, %v11, 0
  %v22 = vsel %vm17, %v12, 0
  %24 = vmatpush.msra.mxu0 0.0
  %25 = vmatpush.msra.mxu0 0.0
  %26 = vmatpush.msra.mxu0 0.0
  %27 = vmatpush.msra.mxu0 0.0
  %28 = vmatpush.msra.mxu0 0.0
  %29 = vmatpush.msra.mxu0 0.0
  %30 = vmatpush.msra.mxu0 0.0
  %31 = vmatpush.msra.mxu0 0.0
  %32 = vmatpush.msra.mxu0 0.0
  %33 = vmatpush.msra.mxu0 0.0
  %34 = vmatpush.msra.mxu0 0.0
  %35 = vmatpush.msra.mxu0 0.0
  %36 = vmatpush.msra.mxu0 0.0
  %37 = vmatpush.msra.mxu0 0.0
  %38 = vmatpush.msra.mxu0 0.0
  %39 = vmatpush.msra.mxu0 %v13
  %40 = vmatmul.f32.gmra.mxu0 %v19
  %v41 = vpop.f32.mrf.mxu0
  %v42 = vadd.f32 %v16, %v41
  %43 = vmatmul.f32.gmra.mxu0 %v22
  %v44 = vpop.f32.mrf.mxu0
  %v45 = vadd.f32 %v16, %v44
  %46 = vdwg.mxu0
  %v47 = vperm.slane %v15, 0
  %v48 = vmul.f32 %v42, %v47
  %v49 = vmul.f32 %v45, %v47
  %52 = vrot.lane.b32.xlu0 %v48, 96
  %v53 = vpop.permute.xlu0 %52
  %54 = vrot.lane.b32.xlu0 %v49, 96
  %v55 = vpop.permute.xlu0 %54
  %vm58 = vcmask 261120
  %v59 = vsel %vm58, %v53, 0.0
  %60 = vadd.xlane.f32.xlu0 %v59
  %v61 = vpop.xlane.xlu0 %60
  %v62 = vsel %vm58, %v55, 0.0
  %63 = vadd.xlane.f32.xlu0 %v62
  %v64 = vpop.xlane.xlu0 %63
  %66 = vrot.lane.b32.xlu0 %v47, 96
  %v67 = vpop.permute.xlu0 %66
  %v69 = vmul.f32 %v42, %v67
  %v70 = vmul.f32 %v45, %v67
  %v71 = vsel %vm58, %v69, 0.0
  %72 = vadd.xlane.f32.xlu0 %v71
  %v73 = vpop.xlane.xlu0 %72
  %v74 = vsel %vm58, %v70, 0.0
  %75 = vadd.xlane.f32.xlu0 %v74
  %v76 = vpop.xlane.xlu0 %75
  %v79 = vrot.slane %v42, 1
  %v80 = vrot.slane %v42, 2
  %v81 = vrot.slane %v42, 3
  %v82 = vrot.slane %v42, 4
  %v83 = vrot.slane %v42, 5
  %v84 = vrot.slane %v42, 6
  %v85 = vrot.slane %v42, 7
  %v86 = vrot.slane %v45, 1
  %v87 = vrot.slane %v45, 2
  %v88 = vrot.slane %v45, 3
  %v89 = vrot.slane %v45, 4
  %v90 = vrot.slane %v45, 5
  %v91 = vrot.slane %v45, 6
  %v92 = vrot.slane %v45, 7
  %v93 = vperm.slane %v42, 0
  %v94 = vperm.slane %v79, 0
  %v95 = vperm.slane %v80, 0
  %v96 = vperm.slane %v81, 0
  %v97 = vperm.slane %v82, 0
  %v98 = vperm.slane %v83, 0
  %v99 = vperm.slane %v84, 0
  %v100 = vperm.slane %v85, 0
  %v101 = vperm.slane %v45, 0
  %v102 = vperm.slane %v86, 0
  %v103 = vperm.slane %v87, 0
  %v104 = vperm.slane %v88, 0
  %v105 = vperm.slane %v89, 0
  %v106 = vperm.slane %v90, 0
  %v107 = vperm.slane %v91, 0
  %v108 = vperm.slane %v92, 0
  %125 = vrot.lane.b32.xlu0 %v42, 32
  %v126 = vpop.permute.xlu0 %125
  %127 = vrot.lane.b32.xlu0 %v45, 32
  %v128 = vpop.permute.xlu0 %127
  %v131 = vadd.f32 %v93, %v126
  %v132 = vadd.f32 %v93, %v128
  %v133 = vadd.f32 %v94, %v126
  %v134 = vadd.f32 %v94, %v128
  %v135 = vadd.f32 %v95, %v126
  %v136 = vadd.f32 %v95, %v128
  %v137 = vadd.f32 %v96, %v126
  %v138 = vadd.f32 %v96, %v128
  %v139 = vadd.f32 %v97, %v126
  %v140 = vadd.f32 %v97, %v128
  %v141 = vadd.f32 %v98, %v126
  %v142 = vadd.f32 %v98, %v128
  %v143 = vadd.f32 %v99, %v126
  %v144 = vadd.f32 %v99, %v128
  %v145 = vadd.f32 %v100, %v126
  %v146 = vadd.f32 %v100, %v128
  %v147 = vadd.f32 %v101, %v126
  %v148 = vadd.f32 %v101, %v128
  %v149 = vadd.f32 %v102, %v126
  %v150 = vadd.f32 %v102, %v128
  %v151 = vadd.f32 %v103, %v126
  %v152 = vadd.f32 %v103, %v128
  %v153 = vadd.f32 %v104, %v126
  %v154 = vadd.f32 %v104, %v128
  %v155 = vadd.f32 %v105, %v126
  %v156 = vadd.f32 %v105, %v128
  %v157 = vadd.f32 %v106, %v126
  %v158 = vadd.f32 %v106, %v128
  %v159 = vadd.f32 %v107, %v126
  %v160 = vadd.f32 %v107, %v128
  %v161 = vadd.f32 %v108, %v126
  %v162 = vadd.f32 %v108, %v128
  %v163 = vmul.f32 %v131, 0.2
  %v164 = vmul.f32 %v132, 0.2
  %v165 = vmul.f32 %v133, 0.2
  %v166 = vmul.f32 %v134, 0.2
  %v167 = vmul.f32 %v135, 0.2
  %v168 = vmul.f32 %v136, 0.2
  %v169 = vmul.f32 %v137, 0.2
  %v170 = vmul.f32 %v138, 0.2
  %v171 = vmul.f32 %v139, 0.2
  %v172 = vmul.f32 %v140, 0.2
  %v173 = vmul.f32 %v141, 0.2
  %v174 = vmul.f32 %v142, 0.2
  %v175 = vmul.f32 %v143, 0.2
  %v176 = vmul.f32 %v144, 0.2
  %v177 = vmul.f32 %v145, 0.2
  %v178 = vmul.f32 %v146, 0.2
  %v179 = vmul.f32 %v147, 0.2
  %v180 = vmul.f32 %v148, 0.2
  %v181 = vmul.f32 %v149, 0.2
  %v182 = vmul.f32 %v150, 0.2
  %v183 = vmul.f32 %v151, 0.2
  %v184 = vmul.f32 %v152, 0.2
  %v185 = vmul.f32 %v153, 0.2
  %v186 = vmul.f32 %v154, 0.2
  %v187 = vmul.f32 %v155, 0.2
  %v188 = vmul.f32 %v156, 0.2
  %v189 = vmul.f32 %v157, 0.2
  %v190 = vmul.f32 %v158, 0.2
  %v191 = vmul.f32 %v159, 0.2
  %v192 = vmul.f32 %v160, 0.2
  %v193 = vmul.f32 %v161, 0.2
  %v194 = vmul.f32 %v162, 0.2
  %v195 = vmax.f32 %v131, %v163
  %v196 = vmax.f32 %v132, %v164
  %v197 = vmax.f32 %v133, %v165
  %v198 = vmax.f32 %v134, %v166
  %v199 = vmax.f32 %v135, %v167
  %v200 = vmax.f32 %v136, %v168
  %v201 = vmax.f32 %v137, %v169
  %v202 = vmax.f32 %v138, %v170
  %v203 = vmax.f32 %v139, %v171
  %v204 = vmax.f32 %v140, %v172
  %v205 = vmax.f32 %v141, %v173
  %v206 = vmax.f32 %v142, %v174
  %v207 = vmax.f32 %v143, %v175
  %v208 = vmax.f32 %v144, %v176
  %v209 = vmax.f32 %v145, %v177
  %v210 = vmax.f32 %v146, %v178
  %v211 = vmax.f32 %v147, %v179
  %v212 = vmax.f32 %v148, %v180
  %v213 = vmax.f32 %v149, %v181
  %v214 = vmax.f32 %v150, %v182
  %v215 = vmax.f32 %v151, %v183
  %v216 = vmax.f32 %v152, %v184
  %v217 = vmax.f32 %v153, %v185
  %v218 = vmax.f32 %v154, %v186
  %v219 = vmax.f32 %v155, %v187
  %v220 = vmax.f32 %v156, %v188
  %v221 = vmax.f32 %v157, %v189
  %v222 = vmax.f32 %v158, %v190
  %v223 = vmax.f32 %v159, %v191
  %v224 = vmax.f32 %v160, %v192
  %v225 = vmax.f32 %v161, %v193
  %v226 = vmax.f32 %v162, %v194
  %227 = vrot.lane.b32.xlu0 %v47, 64
  %v228 = vpop.permute.xlu0 %227
  %v230 = vmul.f32 %v195, %v228
  %v231 = vmul.f32 %v196, %v228
  %v232 = vmul.f32 %v197, %v228
  %v233 = vmul.f32 %v198, %v228
  %v234 = vmul.f32 %v199, %v228
  %v235 = vmul.f32 %v200, %v228
  %v236 = vmul.f32 %v201, %v228
  %v237 = vmul.f32 %v202, %v228
  %v238 = vmul.f32 %v203, %v228
  %v239 = vmul.f32 %v204, %v228
  %v240 = vmul.f32 %v205, %v228
  %v241 = vmul.f32 %v206, %v228
  %v242 = vmul.f32 %v207, %v228
  %v243 = vmul.f32 %v208, %v228
  %v244 = vmul.f32 %v209, %v228
  %v245 = vmul.f32 %v210, %v228
  %v246 = vmul.f32 %v211, %v228
  %v247 = vmul.f32 %v212, %v228
  %v248 = vmul.f32 %v213, %v228
  %v249 = vmul.f32 %v214, %v228
  %v250 = vmul.f32 %v215, %v228
  %v251 = vmul.f32 %v216, %v228
  %v252 = vmul.f32 %v217, %v228
  %v253 = vmul.f32 %v218, %v228
  %v254 = vmul.f32 %v219, %v228
  %v255 = vmul.f32 %v220, %v228
  %v256 = vmul.f32 %v221, %v228
  %v257 = vmul.f32 %v222, %v228
  %v258 = vmul.f32 %v223, %v228
  %v259 = vmul.f32 %v224, %v228
  %v260 = vmul.f32 %v225, %v228
  %v261 = vmul.f32 %v226, %v228
  %294 = vrot.lane.b32.xlu0 %v230, 64
  %v295 = vpop.permute.xlu0 %294
  %296 = vrot.lane.b32.xlu0 %v231, 64
  %v297 = vpop.permute.xlu0 %296
  %298 = vrot.lane.b32.xlu0 %v232, 64
  %v299 = vpop.permute.xlu0 %298
  %300 = vrot.lane.b32.xlu0 %v233, 64
  %v301 = vpop.permute.xlu0 %300
  %302 = vrot.lane.b32.xlu0 %v234, 64
  %v303 = vpop.permute.xlu0 %302
  %304 = vrot.lane.b32.xlu0 %v235, 64
  %v305 = vpop.permute.xlu0 %304
  %306 = vrot.lane.b32.xlu0 %v236, 64
  %v307 = vpop.permute.xlu0 %306
  %308 = vrot.lane.b32.xlu0 %v237, 64
  %v309 = vpop.permute.xlu0 %308
  %310 = vrot.lane.b32.xlu0 %v238, 64
  %v311 = vpop.permute.xlu0 %310
  %312 = vrot.lane.b32.xlu0 %v239, 64
  %v313 = vpop.permute.xlu0 %312
  %314 = vrot.lane.b32.xlu0 %v240, 64
  %v315 = vpop.permute.xlu0 %314
  %316 = vrot.lane.b32.xlu0 %v241, 64
  %v317 = vpop.permute.xlu0 %316
  %318 = vrot.lane.b32.xlu0 %v242, 64
  %v319 = vpop.permute.xlu0 %318
  %320 = vrot.lane.b32.xlu0 %v243, 64
  %v321 = vpop.permute.xlu0 %320
  %322 = vrot.lane.b32.xlu0 %v244, 64
  %v323 = vpop.permute.xlu0 %322
  %324 = vrot.lane.b32.xlu0 %v245, 64
  %v325 = vpop.permute.xlu0 %324
  %326 = vrot.lane.b32.xlu0 %v246, 64
  %v327 = vpop.permute.xlu0 %326
  %328 = vrot.lane.b32.xlu0 %v247, 64
  %v329 = vpop.permute.xlu0 %328
  %330 = vrot.lane.b32.xlu0 %v248, 64
  %v331 = vpop.permute.xlu0 %330
  %332 = vrot.lane.b32.xlu0 %v249, 64
  %v333 = vpop.permute.xlu0 %332
  %334 = vrot.lane.b32.xlu0 %v250, 64
  %v335 = vpop.permute.xlu0 %334
  %336 = vrot.lane.b32.xlu0 %v251, 64
  %v337 = vpop.permute.xlu0 %336
  %338 = vrot.lane.b32.xlu0 %v252, 64
  %v339 = vpop.permute.xlu0 %338
  %340 = vrot.lane.b32.xlu0 %v253, 64
  %v341 = vpop.permute.xlu0 %340
  %342 = vrot.lane.b32.xlu0 %v254, 64
  %v343 = vpop.permute.xlu0 %342
  %344 = vrot.lane.b32.xlu0 %v255, 64
  %v345 = vpop.permute.xlu0 %344
  %346 = vrot.lane.b32.xlu0 %v256, 64
  %v347 = vpop.permute.xlu0 %346
  %348 = vrot.lane.b32.xlu0 %v257, 64
  %v349 = vpop.permute.xlu0 %348
  %350 = vrot.lane.b32.xlu0 %v258, 64
  %v351 = vpop.permute.xlu0 %350
  %352 = vrot.lane.b32.xlu0 %v259, 64
  %v353 = vpop.permute.xlu0 %352
  %354 = vrot.lane.b32.xlu0 %v260, 64
  %v355 = vpop.permute.xlu0 %354
  %356 = vrot.lane.b32.xlu0 %v261, 64
  %v357 = vpop.permute.xlu0 %356
  %v390 = vsel %vm58, %v295, 0.0
  %391 = vadd.xlane.f32.xlu0 %v390
  %v392 = vpop.xlane.xlu0 %391
  %v393 = vsel %vm58, %v297, 0.0
  %394 = vadd.xlane.f32.xlu0 %v393
  %v395 = vpop.xlane.xlu0 %394
  %v396 = vsel %vm58, %v299, 0.0
  %397 = vadd.xlane.f32.xlu0 %v396
  %v398 = vpop.xlane.xlu0 %397
  %v399 = vsel %vm58, %v301, 0.0
  %400 = vadd.xlane.f32.xlu0 %v399
  %v401 = vpop.xlane.xlu0 %400
  %v402 = vsel %vm58, %v303, 0.0
  %403 = vadd.xlane.f32.xlu0 %v402
  %v404 = vpop.xlane.xlu0 %403
  %v405 = vsel %vm58, %v305, 0.0
  %406 = vadd.xlane.f32.xlu0 %v405
  %v407 = vpop.xlane.xlu0 %406
  %v408 = vsel %vm58, %v307, 0.0
  %409 = vadd.xlane.f32.xlu0 %v408
  %v410 = vpop.xlane.xlu0 %409
  %v411 = vsel %vm58, %v309, 0.0
  %412 = vadd.xlane.f32.xlu0 %v411
  %v413 = vpop.xlane.xlu0 %412
  %v414 = vsel %vm58, %v311, 0.0
  %415 = vadd.xlane.f32.xlu0 %v414
  %v416 = vpop.xlane.xlu0 %415
  %v417 = vsel %vm58, %v313, 0.0
  %418 = vadd.xlane.f32.xlu0 %v417
  %v419 = vpop.xlane.xlu0 %418
  %v420 = vsel %vm58, %v315, 0.0
  %421 = vadd.xlane.f32.xlu0 %v420
  %v422 = vpop.xlane.xlu0 %421
  %v423 = vsel %vm58, %v317, 0.0
  %424 = vadd.xlane.f32.xlu0 %v423
  %v425 = vpop.xlane.xlu0 %424
  %v426 = vsel %vm58, %v319, 0.0
  %427 = vadd.xlane.f32.xlu0 %v426
  %v428 = vpop.xlane.xlu0 %427
  %v429 = vsel %vm58, %v321, 0.0
  %430 = vadd.xlane.f32.xlu0 %v429
  %v431 = vpop.xlane.xlu0 %430
  %v432 = vsel %vm58, %v323, 0.0
  %433 = vadd.xlane.f32.xlu0 %v432
  %v434 = vpop.xlane.xlu0 %433
  %v435 = vsel %vm58, %v325, 0.0
  %436 = vadd.xlane.f32.xlu0 %v435
  %v437 = vpop.xlane.xlu0 %436
  %v438 = vsel %vm58, %v327, 0.0
  %439 = vadd.xlane.f32.xlu0 %v438
  %v440 = vpop.xlane.xlu0 %439
  %v441 = vsel %vm58, %v329, 0.0
  %442 = vadd.xlane.f32.xlu0 %v441
  %v443 = vpop.xlane.xlu0 %442
  %v444 = vsel %vm58, %v331, 0.0
  %445 = vadd.xlane.f32.xlu0 %v444
  %v446 = vpop.xlane.xlu0 %445
  %v447 = vsel %vm58, %v333, 0.0
  %448 = vadd.xlane.f32.xlu0 %v447
  %v449 = vpop.xlane.xlu0 %448
  %v450 = vsel %vm58, %v335, 0.0
  %451 = vadd.xlane.f32.xlu0 %v450
  %v452 = vpop.xlane.xlu0 %451
  %v453 = vsel %vm58, %v337, 0.0
  %454 = vadd.xlane.f32.xlu0 %v453
  %v455 = vpop.xlane.xlu0 %454
  %v456 = vsel %vm58, %v339, 0.0
  %457 = vadd.xlane.f32.xlu0 %v456
  %v458 = vpop.xlane.xlu0 %457
  %v459 = vsel %vm58, %v341, 0.0
  %460 = vadd.xlane.f32.xlu0 %v459
  %v461 = vpop.xlane.xlu0 %460
  %v462 = vsel %vm58, %v343, 0.0
  %463 = vadd.xlane.f32.xlu0 %v462
  %v464 = vpop.xlane.xlu0 %463
  %v465 = vsel %vm58, %v345, 0.0
  %466 = vadd.xlane.f32.xlu0 %v465
  %v467 = vpop.xlane.xlu0 %466
  %v468 = vsel %vm58, %v347, 0.0
  %469 = vadd.xlane.f32.xlu0 %v468
  %v470 = vpop.xlane.xlu0 %469
  %v471 = vsel %vm58, %v349, 0.0
  %472 = vadd.xlane.f32.xlu0 %v471
  %v473 = vpop.xlane.xlu0 %472
  %v474 = vsel %vm58, %v351, 0.0
  %475 = vadd.xlane.f32.xlu0 %v474
  %v476 = vpop.xlane.xlu0 %475
  %v477 = vsel %vm58, %v353, 0.0
  %478 = vadd.xlane.f32.xlu0 %v477
  %v479 = vpop.xlane.xlu0 %478
  %v480 = vsel %vm58, %v355, 0.0
  %481 = vadd.xlane.f32.xlu0 %v480
  %v482 = vpop.xlane.xlu0 %481
  %v483 = vsel %vm58, %v357, 0.0
  %484 = vadd.xlane.f32.xlu0 %v483
  %v485 = vpop.xlane.xlu0 %484
  %vm486 = vcmp.gt.f32.partialorder %v11, 0.0
  %vm487 = vcmp.gt.f32.partialorder %v12, 0.0
  %v520 = vlaneseq
  %v521 = vand.u32 %v520, 127
  %v522 = vadd.s32 %v521, 4294967288
  %v523 = vperm.slane %v392, %v522
  %v524 = vadd.s32 %v521, 4294967280
  %v525 = vperm.slane %v395, %v524
  %vm526 = vcmask 195712
  %v527 = vsel %vm526, %v525, %v523
  %v528 = vperm.slane %v398, %v522
  %v529 = vperm.slane %v401, %v524
  %v530 = vsel %vm526, %v529, %v528
  %v531 = vperm.slane %v404, %v522
  %v532 = vperm.slane %v407, %v524
  %v533 = vsel %vm526, %v532, %v531
  %v534 = vperm.slane %v410, %v522
  %v535 = vperm.slane %v413, %v524
  %v536 = vsel %vm526, %v535, %v534
  %v537 = vperm.slane %v416, %v522
  %v538 = vperm.slane %v419, %v524
  %v539 = vsel %vm526, %v538, %v537
  %v540 = vperm.slane %v422, %v522
  %v541 = vperm.slane %v425, %v524
  %v542 = vsel %vm526, %v541, %v540
  %v543 = vperm.slane %v428, %v522
  %v544 = vperm.slane %v431, %v524
  %v545 = vsel %vm526, %v544, %v543
  %v546 = vperm.slane %v434, %v522
  %v547 = vperm.slane %v437, %v524
  %v548 = vsel %vm526, %v547, %v546
  %v549 = vperm.slane %v440, %v522
  %v550 = vperm.slane %v443, %v524
  %v551 = vsel %vm526, %v550, %v549
  %v552 = vperm.slane %v446, %v522
  %v553 = vperm.slane %v449, %v524
  %v554 = vsel %vm526, %v553, %v552
  %v555 = vperm.slane %v452, %v522
  %v556 = vperm.slane %v455, %v524
  %v557 = vsel %vm526, %v556, %v555
  %v558 = vperm.slane %v458, %v522
  %v559 = vperm.slane %v461, %v524
  %v560 = vsel %vm526, %v559, %v558
  %v561 = vperm.slane %v464, %v522
  %v562 = vperm.slane %v467, %v524
  %v563 = vsel %vm526, %v562, %v561
  %v564 = vperm.slane %v470, %v522
  %v565 = vperm.slane %v473, %v524
  %v566 = vsel %vm526, %v565, %v564
  %v567 = vperm.slane %v476, %v522
  %v568 = vperm.slane %v479, %v524
  %v569 = vsel %vm526, %v568, %v567
  %v570 = vperm.slane %v482, %v522
  %v571 = vperm.slane %v485, %v524
  %v572 = vsel %vm526, %v571, %v570
  %vm573 = vcmask 1041409
  %v574 = vsel %vm573, %v530, %v527
  %vm575 = vcmask 1042434
  %v576 = vsel %vm575, %v533, %v574
  %vm577 = vcmask 1043459
  %v578 = vsel %vm577, %v536, %v576
  %vm579 = vcmask 1044484
  %v580 = vsel %vm579, %v539, %v578
  %vm581 = vcmask 1045509
  %v582 = vsel %vm581, %v542, %v580
  %vm583 = vcmask 1046534
  %v584 = vsel %vm583, %v545, %v582
  %vm585 = vcmask 1047559
  %v586 = vsel %vm585, %v548, %v584
  %v587 = vsel %vm573, %v554, %v551
  %v588 = vsel %vm575, %v557, %v587
  %v589 = vsel %vm577, %v560, %v588
  %v590 = vsel %vm579, %v563, %v589
  %v591 = vsel %vm581, %v566, %v590
  %v592 = vsel %vm583, %v569, %v591
  %v593 = vsel %vm585, %v572, %v592
  %v596 = vsel %vm486, %v586, -1.7014117e+38
  %v597 = vsel %vm487, %v593, -1.7014117e+38
  %vm598 = vcmask 195648
  %v599 = vsel %vm598, %v596, -inf
  %600 = vmax.xlane.f32.xlu0 %v599
  %v601 = vpop.xlane.xlu0 %600
  %v602 = vsel %vm598, %v597, -inf
  %603 = vmax.xlane.f32.xlu0 %v602
  %v604 = vpop.xlane.xlu0 %603
  %v605 = vsub.f32 %v596, %v601
  %v606 = vsub.f32 %v597, %v604
  %v607 = vmul.f32 %v605, 1.442695
  %v608 = vpow.pop %v607
  %v609 = vmul.f32 %v606, 1.442695
  %v610 = vpow.pop %v609
  %v611 = vsel %vm486, %v608, 0.0
  %v612 = vsel %vm487, %v610, 0.0
  %615 = vrot.lane.b32.xlu0 %v611, 120
  %v616 = vpop.permute.xlu0 %615
  %617 = vrot.lane.b32.xlu0 %v612, 120
  %v618 = vpop.permute.xlu0 %617
  %vm621 = vcmask 130048
  %v622 = vsel %vm621, %v616, 0.0
  %623 = vadd.xlane.f32.xlu0 %v622
  %v624 = vpop.xlane.xlu0 %623
  %v625 = vsel %vm621, %v618, 0.0
  %626 = vadd.xlane.f32.xlu0 %v625
  %v627 = vpop.xlane.xlu0 %626
  %v628 = vmax.f32 %v624, 1e-30
  %v629 = vmax.f32 %v627, 1e-30
  %v630 = vrcp.pop %v628
  %v631 = vmul.f32 %v628, %v630
  %v632 = vsub.f32 1.0, %v631
  %v633 = vmul.f32 %v630, %v632
  %v634 = vadd.f32 %v630, %v633
  %vm635 = vweird.f32 %v628
  %vm636 = vweird.f32 %v630
  %vm637 = vmor %vm635, %vm636
  %v638 = vsel %vm637, %v630, %v634
  %v639 = vand.u32 2147483647, %v628
  %vm640 = vcmp.eq.f32.partialorder %v639, 8.507059e+37
  %v641 = vand.u32 %v628, 2147483648
  %v642 = vor.u32 1.1754944e-38, %v641
  %v643 = vsel %vm640, %v642, %v638
  %v644 = vmul.f32 %v611, %v643
  %v645 = vrcp.pop %v629
  %v646 = vmul.f32 %v629, %v645
  %v647 = vsub.f32 1.0, %v646
  %v648 = vmul.f32 %v645, %v647
  %v649 = vadd.f32 %v645, %v648
  %vm650 = vweird.f32 %v629
  %vm651 = vweird.f32 %v645
  %vm652 = vmor %vm650, %vm651
  %v653 = vsel %vm652, %v645, %v649
  %v654 = vand.u32 2147483647, %v629
  %vm655 = vcmp.eq.f32.partialorder %v654, 8.507059e+37
  %v656 = vand.u32 %v629, 2147483648
  %v657 = vor.u32 1.1754944e-38, %v656
  %v658 = vsel %vm655, %v657, %v653
  %v659 = vmul.f32 %v612, %v658
  %v662 = vperm.slane %v61, %v522
  %v663 = vperm.slane %v64, %v524
  %v664 = vsel %vm526, %v663, %v662
  %v665 = vsel %vm575, %v664, %v664
  %v666 = vsel %vm577, %v664, %v665
  %v667 = vsel %vm579, %v664, %v666
  %v668 = vsel %vm581, %v664, %v667
  %v669 = vsel %vm583, %v664, %v668
  %v670 = vsel %vm585, %v664, %v669
  %v672 = vmul.f32 %v644, %v670
  %v673 = vmul.f32 %v659, %v670
  %676 = vrot.lane.b32.xlu0 %v672, 120
  %v677 = vpop.permute.xlu0 %676
  %678 = vrot.lane.b32.xlu0 %v673, 120
  %v679 = vpop.permute.xlu0 %678
  %v682 = vsel %vm621, %v677, 0.0
  %683 = vadd.xlane.f32.xlu0 %v682
  %v684 = vpop.xlane.xlu0 %683
  %v685 = vsel %vm621, %v679, 0.0
  %686 = vadd.xlane.f32.xlu0 %v685
  %v687 = vpop.xlane.xlu0 %686
  %v688 = vadd.f32 %v684, %v73
  %v689 = vadd.f32 %v687, %v76
  %v690 = vadd.f32 %v688, %v47
  %v691 = vadd.f32 %v689, %v47
  %693 = vset.pattern.permute.xlu0 64
  %694 = vperm.xlu0 %693, %v690
  %v695 = vpop.permute.xlu0 %694
  %698 = vset.pattern.permute.xlu0 64
  %699 = vperm.xlu0 %698, %v691
  %v700 = vpop.permute.xlu0 %699
  %702 = vst [vmem:[%s2] sm:$0xff] %v695
  %703 = vst [vmem:[%s2 + $0x8] sm:$0xff] %v700
  // Predicated region
  $region10: #{gat_v2_forward.1} parent=0 // pred_check
    _
  $region11: #{gat_v2_forward.1} parent=0 // pred_check_branch
    %705 = sbr.rel (0) target = $region13
  $region12: #{gat_v2_forward.1} parent=0 // pred_region
    _
  $region13: #{gat_v2_forward.1} parent=0 // pred_fallthru
    _
  // Predicated region
  $region14: #{gat_v2_forward.1} parent=0 // pred_check
    _
  $region15: #{gat_v2_forward.1} parent=0 // pred_check_branch
    %707 = sbr.rel (0) target = $region17
  $region16: #{gat_v2_forward.1} parent=0 // pred_region
    _
  $region17: #{gat_v2_forward.1} parent=0 // pred_fallthru
    _

</llo_original>
